<compile_context>
chip_gen: v5e
topology: v5e:2x2
jax: 0.10.0
libtpu: 0.0.40
codegen_flags: <defaults>
</compile_context>

<pallas_src>
import jax
import jax.numpy as jnp
from jax.experimental import pallas as pl
from jax.experimental.pallas import tpu as pltpu

_MiB = 1024 * 1024


def _add_norm_kernel(x_ref, mean_ref, inv_std_ref, o_ref):
    # x_ref:       (TR, TL) flattened image tile
    # mean_ref:    (TR, 1)  per-row (batch*channel) mean, broadcast across lanes
    # inv_std_ref: (TR, 1)  per-row 1/std
    o_ref[...] = (x_ref[...] - mean_ref[...]) * inv_std_ref[...]


def _vmem_budget():
    """(per-tile byte budget, vmem_limit_bytes) chosen per TPU generation."""
    try:
        cap = pltpu.get_tpu_info().vmem_capacity_bytes
    except Exception:
        cap = None
    if cap is not None and cap >= 100 * _MiB:   # v5e / v6e: 128 MiB physical VMEM
        return 8 * _MiB, 64 * _MiB
    if cap is not None and cap >= 48 * _MiB:    # v7x: 64 MiB physical per TC
        return 6 * _MiB, 32 * _MiB              # ~24 MiB live (4 buffers) + headroom
    return 4 * _MiB, 32 * _MiB                  # unknown backend: conservative


def _choose_tiles(R, L, tile_budget_bytes, elem_bytes):
    """Pick (tr, tl): lane-dense, budget-bound tiles. Each dim is either a legal
    multiple (8 sublane / 128 lane) or the full array dim."""
    max_elems = max(tile_budget_bytes // elem_bytes, 8 * 128)

    # Base sublane tile.
    tr = R if R <= 256 else 256

    # Lane tile: full row if it fits the budget, else largest 128-multiple.
    if L <= 128 or L * tr <= max_elems:
        tl = L
    else:
        tl = max(((max_elems // tr) // 128) * 128, 128)
        tl = min(tl, (L // 128) * 128)

    # Whole row fits -> spend the remaining budget on more rows per tile
    # (important when H*W is small, so tiles never shrink below ~1 MiB).
    if tl == L:
        tr_big = max(max_elems // max(L, 1), 1)
        if tr_big >= R or R < 8:
            tr = R
        else:
            tr = max((tr_big // 8) * 8, 8)

    # Megacore guard: for large inputs don't collapse to a (1,1) grid, or one
    # v7x TensorCore sits idle. Halve the lane tile (128-aligned) instead.
    big_enough = R * L * elem_bytes >= 1 * _MiB
    if big_enough and pl.cdiv(R, tr) == 1 and pl.cdiv(L, tl) == 1:
        if L >= 256:
            tl = max(((L // 2 + 127) // 128) * 128, 128)
        elif R >= 16:
            tr = max(((R // 2 + 7) // 8) * 8, 8)

    return tr, tl


def add_norm(x, mean, std):
    """x: (N, C, H, W) float; mean/std broadcastable per-channel params
    (e.g. (1, C, 1, 1)). Returns (x - mean) / std with shape (N, C, H, W)."""
    N, C, H, W = x.shape
    R, L = N * C, H * W

    # Normalize parameter shapes (scalars-per-channel), then expand to per-row.
    mean_c = jnp.asarray(mean, dtype=x.dtype).reshape(-1)
    std_c = jnp.asarray(std, dtype=x.dtype).reshape(-1)
    assert mean_c.shape[0] == C and std_c.shape[0] == C, "mean/std must have C entries"

    x2 = x.reshape(R, L)
    # Precompute reciprocal once (only C values) so the kernel does a VALU
    # multiply, not a per-element divide.
    mean2 = jnp.broadcast_to(mean_c.reshape(1, C, 1), (N, C, 1)).reshape(R, 1)
    inv_std2 = jnp.broadcast_to((1.0 / std_c).reshape(1, C, 1), (N, C, 1)).reshape(R, 1)

    elem_bytes = jnp.dtype(x.dtype).itemsize
    tile_budget, vmem_limit = _vmem_budget()
    tr, tl = _choose_tiles(R, L, tile_budget, elem_bytes)
    grid = (pl.cdiv(R, tr), pl.cdiv(L, tl))  # L inner: mean/inv_std blocks stay resident

    cost = pl.CostEstimate(
        flops=int(2 * R * L),
        transcendentals=0,
        bytes_accessed=int(2 * R * L * elem_bytes + 2 * R * elem_bytes),
    )

    out = pl.pallas_call(
        _add_norm_kernel,
        out_shape=jax.ShapeDtypeStruct((R, L), x.dtype),
        grid=grid,
        in_specs=[
            pl.BlockSpec((tr, tl), lambda i, j: (i, j)),
            pl.BlockSpec((tr, 1), lambda i, j: (i, 0)),   # constant across inner j loop
            pl.BlockSpec((tr, 1), lambda i, j: (i, 0)),
        ],
        out_specs=pl.BlockSpec((tr, tl), lambda i, j: (i, j)),
        compiler_params=pltpu.CompilerParams(
            dimension_semantics=("parallel", "parallel"),
            vmem_limit_bytes=vmem_limit,
        ),
        cost_estimate=cost,
    )(x2, mean2, inv_std2)

    return out.reshape(N, C, H, W)


def omodel(x):
    # TODO(synk): `Omodel` is an arbitrary user-supplied submodule with no
    # definition in the reference; modeled as identity. In a real model the
    # normalization should be fused into its first op (or folded into that
    # op's weights/bias) to remove this kernel's standalone HBM read+write pass.
    return x


def add_norm_forward(x, mean, std):
    x = add_norm(x, mean, std)
    x = omodel(x)
    return x


if __name__ == "__main__":
    key = jax.random.PRNGKey(0)
    N, C, H, W = 2, 3, 16, 16
    x = jax.random.uniform(key, (N, C, H, W), dtype=jnp.float32)

    # Parameters initialized exactly as in the PyTorch module __init__.
    mean = jnp.array([0.485, 0.456, 0.406], dtype=jnp.float32).reshape(1, 3, 1, 1)
    std = jnp.array([0.229, 0.224, 0.225], dtype=jnp.float32).reshape(1, 3, 1, 1)

    out = add_norm_forward(x, mean, std)
    out = jax.block_until_ready(out)

    # Sanity check against plain-JAX reference (reciprocal-multiply differs from
    # the divide by <= ~1 ULP per element, well inside these tolerances).
    ref = (x - mean) / std
    assert out.shape == (N, C, H, W)
    assert jnp.allclose(out, ref, atol=1e-5, rtol=1e-6)

    print("KERNEL_OK")
</pallas_src>

<mosaic_0001>
module attributes {stable_mosaic.version = 11 : i64} {
  func.func @_add_norm_kernel(%arg0: i32, %arg1: i32, %arg2: memref<6x256xf32, #tpu.memory_space<vmem>>, %arg3: memref<6x1xf32, #tpu.memory_space<vmem>>, %arg4: memref<6x1xf32, #tpu.memory_space<vmem>>, %arg5: memref<6x256xf32, #tpu.memory_space<vmem>>) attributes {dimension_semantics = [#tpu.dimension_semantics<parallel>, #tpu.dimension_semantics<parallel>], iteration_bounds = array<i64: 1, 1>, scalar_prefetch = 0 : i64, scratch_operands = 0 : i64, tpu.core_type = #tpu.core_type<tc>, window_params = [{transform_indices = @transform_0, window_bounds = array<i64: 6, 256>}, {transform_indices = @transform_1, window_bounds = array<i64: 6, 1>}, {transform_indices = @transform_2, window_bounds = array<i64: 6, 1>}, {transform_indices = @transform_3, window_bounds = array<i64: 6, 256>}]} {
    %c0 = arith.constant 0 : index
    %c0_0 = arith.constant 0 : index
    %0 = vector.load %arg2[%c0, %c0_0] : memref<6x256xf32, #tpu.memory_space<vmem>>, vector<6x256xf32>
    %c0_1 = arith.constant 0 : index
    %c0_2 = arith.constant 0 : index
    %1 = vector.load %arg3[%c0_1, %c0_2] : memref<6x1xf32, #tpu.memory_space<vmem>>, vector<6x1xf32>
    %2 = vector.broadcast %1 : vector<6x1xf32> to vector<6x256xf32>
    %3 = arith.subf %0, %2 : vector<6x256xf32>
    %c0_3 = arith.constant 0 : index
    %c0_4 = arith.constant 0 : index
    %4 = vector.load %arg4[%c0_3, %c0_4] : memref<6x1xf32, #tpu.memory_space<vmem>>, vector<6x1xf32>
    %5 = vector.broadcast %4 : vector<6x1xf32> to vector<6x256xf32>
    %6 = arith.mulf %3, %5 : vector<6x256xf32>
    %c0_5 = arith.constant 0 : index
    %c0_6 = arith.constant 0 : index
    %7 = vector.load %arg5[%c0_5, %c0_6] : memref<6x256xf32, #tpu.memory_space<vmem>>, vector<6x256xf32>
    tpu.vector_store %arg5[%c0_5, %c0_6], %6 {strides = array<i32>} : memref<6x256xf32, #tpu.memory_space<vmem>>, vector<6x256xf32>,
    return
  }
  func.func @transform_0(%arg0: i32, %arg1: i32) -> (i32, i32) {
    %c0_i32 = arith.constant 0 : i32
    return %arg0, %arg1 : i32, i32
  }
  func.func @transform_1(%arg0: i32, %arg1: i32) -> (i32, i32) {
    %c0_i32 = arith.constant 0 : i32
    %c0_i32_0 = arith.constant 0 : i32
    return %arg0, %c0_i32 : i32, i32
  }
  func.func @transform_2(%arg0: i32, %arg1: i32) -> (i32, i32) {
    %c0_i32 = arith.constant 0 : i32
    %c0_i32_0 = arith.constant 0 : i32
    return %arg0, %c0_i32 : i32, i32
  }
  func.func @transform_3(%arg0: i32, %arg1: i32) -> (i32, i32) {
    %c0_i32 = arith.constant 0 : i32
    return %arg0, %arg1 : i32, i32
  }
}

</mosaic_0001>

<llo_original>
// kernel: tpu_custom_call.1
$region0: #{tpu_custom_call.1}
  #allocation0 [shape = 'u32[]', space=smem, size = 0x4, offset = 0x4, fixed_abs, tag = 'smem constant byte address 0x4 - core index']
  #allocation1 [shape = 'u32[72,128]{1,0:T(1,128)}', space=vmem, size = 0x9000, scoped, tag = 'internal scratch']
  %s0 = inlined_call_operand.vmem [shape: f32[6,256], index: 0, kind: input, shape index: {}]
  %s1 = inlined_call_operand.vmem [shape: f32[6,1], index: 1, kind: input, shape index: {}]
  %s2 = inlined_call_operand.vmem [shape: f32[6,1], index: 2, kind: input, shape index: {}]
  %s3 = inlined_call_operand.hbm [shape: f32[6,256], index: 3, kind: output, shape index: {}]
  %s4 = sld [smem:[#allocation0]]
  $region22: #{tpu_custom_call.1} parent=0
    _
  %s6 = ssub.s32 1, %s4
  %s7 = scalar_select 0, %s6, %s4
  $region1: #{tpu_custom_call.1} parent=0
    #allocation2 [shape = 'u8[8192]{0}', space=vmem, size = 0x2000, scoped, tag = 'output window, operand 0, single buffered']
    #allocation3 [shape = 's32[1]{0}', space=sflag, size = 0x4, scoped, tag = 'scoped memory for tpu_custom_call.1']
    %8 = vsyncpa [#allocation3], 0
    // Predicated region
    $region2: #{tpu_custom_call.1} parent=1 // pred_check
      _
    $region3: #{tpu_custom_call.1} parent=1 // pred_check_branch
      %10 = sbr.rel (0) target = $region5
    $region4: #{tpu_custom_call.1} parent=1 // pred_region
      _
    $region5: #{tpu_custom_call.1} parent=1 // pred_fallthru
      _
    // Predicated region
    $region6: #{tpu_custom_call.1} parent=1 // pred_check
      _
    $region7: #{tpu_custom_call.1} parent=1 // pred_check_branch
      %12 = sbr.rel (0) target = $region9
    $region8: #{tpu_custom_call.1} parent=1 // pred_region
      _
    $region9: #{tpu_custom_call.1} parent=1 // pred_fallthru
      _
    // Predicated region
    $region10: #{tpu_custom_call.1} parent=1 // pred_check
      _
    $region11: #{tpu_custom_call.1} parent=1 // pred_check_branch
      %14 = sbr.rel (0) target = $region13
    $region12: #{tpu_custom_call.1} parent=1 // pred_region
      _
    $region13: #{tpu_custom_call.1} parent=1 // pred_fallthru
      _
    %v15 = vld [vmem:[%s0] sm:$0x3f]
    %v16 = vld [vmem:[%s0 + $0x8] sm:$0x3f]
    %v17 = vld [vmem:[%s1] sm:$0x3f]
    %19 = vset.pattern.permute.xlu0 0
    %20 = vperm.xlu0 %19, %v17
    %v21 = vpop.permute.xlu0 %20
    %v23 = vsub.f32 %v15, %v21
    %v24 = vsub.f32 %v16, %v21
    %v25 = vld [vmem:[%s2] sm:$0x3f]
    %27 = vset.pattern.permute.xlu0 0
    %28 = vperm.xlu0 %27, %v25
    %v29 = vpop.permute.xlu0 %28
    %v31 = vmul.f32 %v23, %v29
    %v32 = vmul.f32 %v24, %v29
    %33 = vst [vmem:[#allocation2] sm:$0x3f] %v31
    %34 = vst [vmem:[#allocation2 + $0x8] sm:$0x3f] %v32
    // Predicated region
    $region14: #{tpu_custom_call.1} parent=1 // pred_check
      _
    $region15: #{tpu_custom_call.1} parent=1 // pred_check_branch
      %36 = sbr.rel (0) target = $region17
    $region16: #{tpu_custom_call.1} parent=1 // pred_region
      %38 = vsyncadd [#allocation3], 0
      %s40 = sshll.u32 [#allocation2], 4
      %s41 = int_to_ptr.vmem [resolvable:$true] %s40
      %s42 = sshll.u32 %s3, 4
      %s43 = int_to_ptr.hbm [resolvable:$true] %s42
      %45 = dma.vmem_to_hbm [thread:$0]  %s41, 256, %s43, [#allocation3]
    $region17: #{tpu_custom_call.1} parent=1 // pred_fallthru
      _
    // Predicated region
    $region18: #{tpu_custom_call.1} parent=1 // pred_check
      _
    $region19: #{tpu_custom_call.1} parent=1 // pred_check_branch
      %47 = sbr.rel (0) target = $region21
    $region20: #{tpu_custom_call.1} parent=1 // pred_region
      %49 = dma.done [#allocation3], 256
    $region21: #{tpu_custom_call.1} parent=1 // pred_fallthru
      _
    %50 = vsyncpa [#allocation3], 1

</llo_original>
